<compile_context>
chip_gen: v7x
topology: tpu7x:2x2x1
jax: 0.10.0
libtpu: 0.0.40
codegen_flags: <defaults>
</compile_context>

<pallas_src>
import functools
import math

import jax
import jax.numpy as jnp
from jax.experimental import pallas as pl
from jax.experimental.pallas import tpu as pltpu

_TARGET_BLOCK_BYTES = 2 * 1024 * 1024  # ~2 MiB output blocks (v5e/v6e/v7x safe)
_MAX_BATCH_PER_BLOCK = 16              # cap on batch copies folded into one block


def _choose_tiles(batch, x_packed, lanes, dtype, max_tile_rows=None):
    """Pick (tile_rows, batch_per_block).

    tile_rows: byte-budgeted (~2 MiB per block), layout-legal (multiple of the sublane
    packing or the full extent), and such that there are >= 2 x-tiles when possible so
    v7x's two TensorCores both get work on the "parallel" axis.
    batch_per_block: when a single x-tile is small, fold several (identical) batch
    copies into one output block to keep per-grid-step DMAs reasonably large.
    """
    itemsize = jnp.dtype(dtype).itemsize
    min_rows = 8 if itemsize >= 4 else (16 if itemsize == 2 else 32)
    row_bytes = max(1, lanes * itemsize)

    budget_rows = max(min_rows, _TARGET_BLOCK_BYTES // row_bytes)
    if x_packed >= 2 * min_rows:               # keep >= 2 x-tiles when there is work
        budget_rows = min(budget_rows, -(-x_packed // 2))
    if max_tile_rows is not None:
        budget_rows = min(budget_rows, max(1, max_tile_rows))

    tile_rows = max(min_rows, (budget_rows // min_rows) * min_rows)
    if tile_rows >= x_packed:
        tile_rows = x_packed                   # full extent is always layout-legal

    tile_bytes = tile_rows * row_bytes
    bt = 1
    if tile_bytes < _TARGET_BLOCK_BYTES // 2:  # x-tile alone is small: fold batch in
        bt = min(batch, max(1, _TARGET_BLOCK_BYTES // tile_bytes), _MAX_BATCH_PER_BLOCK)
        bt = max(1, bt)
        while batch % bt:                      # keep it a divisor of batch
            bt -= 1
    return tile_rows, bt


def _pe1d_kernel(params_ref, out_ref, emb_ref, *, rows_per_group, batch_per_block):
    """Grid step (xi, bg).

    params_ref: (2, lanes) f32 — row 0: per-lane inv_freq; row 1: per-lane bias
                (= in-row position offset * inv_freq + {0 for sin half, pi/2 for cos}).
    out_ref   : (batch_per_block, tile_rows, lanes) output block (input dtype).
    emb_ref   : (tile_rows, lanes) VMEM scratch caching the tile across batch groups.
    """
    xi = pl.program_id(0)   # read program ids ONLY at the top level (interpret-safe)
    bg = pl.program_id(1)
    tile_rows, lanes = emb_ref.shape
    base = xi * (tile_rows * rows_per_group)   # first logical position of this x-tile

    @pl.when(bg == 0)
    def _compute_tile():
        params = params_ref[...]
        freq = params[0:1, :]
        bias = params[1:2, :]
        row = jax.lax.broadcasted_iota(jnp.int32, (tile_rows, lanes), 0)
        pos = (base + row * rows_per_group).astype(jnp.float32)
        phase = pos * freq + bias              # cos(x) == sin(x + pi/2)
        emb_ref[...] = jnp.sin(phase).astype(emb_ref.dtype)

    tile = emb_ref[...]
    for bi in range(batch_per_block):          # static, small unrolled copy loop
        out_ref[bi] = tile


class PositionalEncoding1D:
    """JAX/Pallas port of the PyTorch PositionalEncoding1D module (cat(sin, cos))."""

    def __init__(self, channels: int):
        self.channels = channels
        # inv_freq = 1 / 10000 ** (arange(0, channels, 2) / channels)
        self.inv_freq = 1.0 / (
            10000.0 ** (jnp.arange(0, channels, 2, dtype=jnp.float32) / channels))

    def __call__(self, tensor, *, max_tile_rows=None):
        if tensor.ndim != 3:
            raise RuntimeError("The input tensor has to be 3d!")
        batch, x, orig_ch = tensor.shape
        dtype = tensor.dtype
        itemsize = jnp.dtype(dtype).itemsize
        half = self.inv_freq.shape[0]
        # emb = cat(sin, cos)[:, :orig_ch] — output channel count (matches the spec).
        c_out = min(orig_ch, 2 * half)

        # Lane-dense packing: pack rows_per_group consecutive positions into one row so
        # the last output dim becomes a multiple of 128 lanes.  rows_per_group =
        # lcm(c_out, 128) / c_out = 128 / gcd(c_out, 128).
        rpg = 128 // math.gcd(c_out, 128)
        if rpg > 1 and (x % rpg != 0 or rpg * c_out * itemsize > 64 * 1024):
            rpg = 1                            # fallback: last dim = full c_out extent
        lanes = rpg * c_out
        x_packed = x // rpg

        # Host-side per-lane tables: lane l <-> (in-row offset g = l // c_out,
        # channel c = l % c_out).  freq_lane[l] = inv_freq[c mod half];
        # bias_lane[l] = g * freq + (0 if sin half else pi/2).
        ch = jnp.arange(c_out)
        ch_freq = jnp.concatenate([self.inv_freq, self.inv_freq])[:c_out]
        ch_phase = jnp.where(ch < half, 0.0, jnp.pi / 2).astype(jnp.float32)
        g = jnp.arange(rpg, dtype=jnp.float32)[:, None]
        freq_lane = jnp.tile(ch_freq, rpg)
        bias_lane = (g * ch_freq[None, :] + ch_phase[None, :]).reshape(-1)
        params = jnp.stack([freq_lane, bias_lane]).astype(jnp.float32)  # (2, lanes)

        tile_rows, bt = _choose_tiles(batch, x_packed, lanes, dtype, max_tile_rows)
        num_x_tiles = pl.cdiv(x_packed, tile_rows)
        num_bg = batch // bt
        block_bytes = bt * tile_rows * lanes * itemsize

        kernel = functools.partial(
            _pe1d_kernel, rows_per_group=rpg, batch_per_block=bt)

        cost = pl.CostEstimate(
            flops=2 * x * c_out,                 # fma per tile element (computed once)
            transcendentals=x * c_out,           # single sin per tile element
            bytes_accessed=batch * x * c_out * itemsize + 8 * lanes)

        out_packed = pl.pallas_call(
            kernel,
            out_shape=jax.ShapeDtypeStruct((batch, x_packed, lanes), dtype),
            grid=(num_x_tiles, num_bg),
            in_specs=[pl.BlockSpec((2, lanes), lambda xi, bg: (0, 0))],
            out_specs=pl.BlockSpec((bt, tile_rows, lanes), lambda xi, bg: (bg, xi, 0)),
            scratch_shapes=[pltpu.VMEM((tile_rows, lanes), dtype)],
            compiler_params=pltpu.CompilerParams(
                dimension_semantics=("parallel", "arbitrary"),
                vmem_limit_bytes=max(16 * 1024 * 1024, 5 * block_bytes)),
            cost_estimate=cost,
        )(params)

        # Free reshape: (batch, x_packed, rpg*c_out) -> (batch, x, c_out) is the same
        # row-major bytes.
        return out_packed.reshape(batch, x, c_out)


def _reference(tensor, channels):
    """Pure-JAX mirror of the PyTorch forward (cat(sin, cos), truncated to orig_ch)."""
    batch, x, orig_ch = tensor.shape
    inv_freq = 1.0 / (10000.0 ** (jnp.arange(0, channels, 2, dtype=jnp.float32) / channels))
    pos_x = jnp.arange(x, dtype=jnp.float32)
    sin_inp = jnp.einsum("i,j->ij", pos_x, inv_freq)
    emb_x = jnp.concatenate([jnp.sin(sin_inp), jnp.cos(sin_inp)], axis=-1)
    c_out = min(orig_ch, emb_x.shape[1])
    emb = emb_x[:, :c_out].astype(tensor.dtype)
    return jnp.broadcast_to(emb[None, :, :], (batch, x, c_out))


if __name__ == "__main__":
    key = jax.random.PRNGKey(0)

    # (batch, x, channels, dtype, max_tile_rows, atol)
    cases = [
        (2, 8, 32, jnp.float32, None, 1e-5),   # lane-packed (C=32 -> 4 pos/row), batch-folded block
        (2, 64, 32, jnp.float32, 8, 1e-4),     # multi x-tile + cached-tile reuse across batch
        (2, 8, 32, jnp.bfloat16, None, 2e-2),  # bf16 output, f32 math in-kernel
        (2, 16, 48, jnp.float32, None, 1e-4),  # lcm packing for non-power-of-two C (lanes=384)
        (2, 10, 48, jnp.float32, None, 1e-4),  # fallback path (x not divisible by 128/gcd)
        (3, 24, 64, jnp.float32, None, 1e-4),  # batch=3 folded into one block
    ]
    for batch, x, chs, dtype, max_rows, atol in cases:
        key, sub = jax.random.split(key)
        t = jax.random.normal(sub, (batch, x, chs), dtype=jnp.float32).astype(dtype)
        mod = PositionalEncoding1D(chs)
        out = jax.block_until_ready(mod(t, max_tile_rows=max_rows))
        ref = _reference(t, chs)
        assert out.shape == t.shape, (out.shape, t.shape)
        assert out.dtype == t.dtype, (out.dtype, t.dtype)
        ok = jnp.allclose(out.astype(jnp.float32), ref.astype(jnp.float32),
                          atol=atol, rtol=1e-4)
        assert bool(ok), f"mismatch vs reference for case {(batch, x, chs, dtype)}"

    print("KERNEL_OK")
</pallas_src>

<mosaic_0001>
module attributes {stable_mosaic.version = 11 : i64} {
  func.func @_pe1d_kernel(%arg0: i32, %arg1: i32, %arg2: memref<2x128xf32, #tpu.memory_space<vmem>>, %arg3: memref<2x2x128xf32, #tpu.memory_space<vmem>>, %arg4: memref<2x128xf32, #tpu.memory_space<vmem>>) attributes {dimension_semantics = [#tpu.dimension_semantics<parallel>, #tpu.dimension_semantics<arbitrary>], iteration_bounds = array<i64: 1, 1>, scalar_prefetch = 0 : i64, scratch_operands = 1 : i64, tpu.core_type = #tpu.core_type<tc>, window_params = [{pipeline_mode = #tpu.pipeline_mode<synchronous>, transform_indices = @transform_0, window_bounds = array<i64: 2, 128>}, {transform_indices = @transform_1, window_bounds = array<i64: 2, 2, 128>}]} {
    %c8_i32 = arith.constant 8 : i32
    %0 = arith.muli %arg0, %c8_i32 : i32
    %c0_i32 = arith.constant 0 : i32
    %1 = arith.cmpi eq, %arg1, %c0_i32 : i32
    %2 = arith.extui %1 : i1 to i32
    %c0_i32_0 = arith.constant 0 : i32
    %3 = arith.cmpi ne, %2, %c0_i32_0 : i32
    scf.if %3 {
      %c0_7 = arith.constant 0 : index
      %c0_8 = arith.constant 0 : index
      %11 = vector.load %arg2[%c0_7, %c0_8] : memref<2x128xf32, #tpu.memory_space<vmem>>, vector<2x128xf32>
      %12 = vector.extract_strided_slice %11 {offsets = [0, 0], sizes = [1, 128], strides = [1, 1]} : vector<2x128xf32> to vector<1x128xf32>
      %13 = vector.extract_strided_slice %11 {offsets = [1, 0], sizes = [1, 128], strides = [1, 1]} : vector<2x128xf32> to vector<1x128xf32>
      %14 = tpu.iota {dimensions = array<i32: 0>} : vector<2x128xi32>
      %c4_i32 = arith.constant 4 : i32
      %15 = vector.broadcast %c4_i32 : i32 to vector<2x128xi32>
      %16 = arith.muli %14, %15 : vector<2x128xi32>
      %17 = vector.broadcast %0 : i32 to vector<2x128xi32>
      %18 = arith.addi %17, %16 : vector<2x128xi32>
      %19 = arith.sitofp %18 : vector<2x128xi32> to vector<2x128xf32>
      %20 = vector.broadcast %12 : vector<1x128xf32> to vector<2x128xf32>
      %21 = arith.mulf %19, %20 : vector<2x128xf32>
      %22 = vector.broadcast %13 : vector<1x128xf32> to vector<2x128xf32>
      %23 = arith.addf %21, %22 : vector<2x128xf32>
      %24 = math.sin %23 : vector<2x128xf32>
      %c0_9 = arith.constant 0 : index
      %c0_10 = arith.constant 0 : index
      %25 = vector.load %arg4[%c0_9, %c0_10] : memref<2x128xf32, #tpu.memory_space<vmem>>, vector<2x128xf32>
      tpu.vector_store %arg4[%c0_9, %c0_10], %24 {strides = array<i32>} : memref<2x128xf32, #tpu.memory_space<vmem>>, vector<2x128xf32>,
    } else {
    }
    %c0 = arith.constant 0 : index
    %c0_1 = arith.constant 0 : index
    %4 = vector.load %arg4[%c0, %c0_1] : memref<2x128xf32, #tpu.memory_space<vmem>>, vector<2x128xf32>
    %c0_2 = arith.constant 0 : index
    %c0_3 = arith.constant 0 : index
    %c0_4 = arith.constant 0 : index
    %5 = vector.load %arg3[%c0_2, %c0_3, %c0_4] : memref<2x2x128xf32, #tpu.memory_space<vmem>>, vector<1x2x128xf32>
    %6 = vector.shape_cast %5 : vector<1x2x128xf32> to vector<2x128xf32>
    %7 = vector.shape_cast %4 : vector<2x128xf32> to vector<1x2x128xf32>
    tpu.vector_store %arg3[%c0_2, %c0_3, %c0_4], %7 {strides = array<i32>} : memref<2x2x128xf32, #tpu.memory_space<vmem>>, vector<1x2x128xf32>,
    %c1 = arith.constant 1 : index
    %c0_5 = arith.constant 0 : index
    %c0_6 = arith.constant 0 : index
    %8 = vector.load %arg3[%c1, %c0_5, %c0_6] : memref<2x2x128xf32, #tpu.memory_space<vmem>>, vector<1x2x128xf32>
    %9 = vector.shape_cast %8 : vector<1x2x128xf32> to vector<2x128xf32>
    %10 = vector.shape_cast %4 : vector<2x128xf32> to vector<1x2x128xf32>
    tpu.vector_store %arg3[%c1, %c0_5, %c0_6], %10 {strides = array<i32>} : memref<2x2x128xf32, #tpu.memory_space<vmem>>, vector<1x2x128xf32>,
    return
  }
  func.func @transform_0(%arg0: i32, %arg1: i32) -> (i32, i32) {
    %c0_i32 = arith.constant 0 : i32
    %c0_i32_0 = arith.constant 0 : i32
    %c0_i32_1 = arith.constant 0 : i32
    return %c0_i32, %c0_i32_0 : i32, i32
  }
  func.func @transform_1(%arg0: i32, %arg1: i32) -> (i32, i32, i32) {
    %c0_i32 = arith.constant 0 : i32
    %c0_i32_0 = arith.constant 0 : i32
    return %arg1, %arg0, %c0_i32 : i32, i32, i32
  }
}

</mosaic_0001>

<llo_original>
// kernel: tpu_custom_call.1
$region0: #{tpu_custom_call.1}
  #allocation0 [shape = 'u32[]', space=smem, size = 0x4, offset = 0x4, fixed_abs, tag = 'smem constant byte address 0x4 - core index']
  #allocation1 [shape = 'u32[144,128]{1,0:T(1,128)}', space=vmem, size = 0x12000, scoped, tag = 'internal scratch']
  #allocation2 [shape = 'f32[2,128]{1,0:T(2,128)}', space=vmem, size = 0x400, scoped, tag = 'scratch operand']
  %s0 = inlined_call_operand.hbm [shape: f32[2,128], index: 0, kind: input, shape index: {}]
  %s1 = inlined_call_operand.hbm [shape: f32[2,2,128], index: 1, kind: output, shape index: {}]
  %s2 = sld [smem:[#allocation0]]
  $region22: #{tpu_custom_call.1} parent=0
    _
  %s4 = ssub.s32 1, %s2
  %s5 = scalar_select 0, %s4, %s2
  $region1: #{tpu_custom_call.1} parent=0
    #allocation3 [shape = 'u8[1024]{0}', space=vmem, size = 0x400, scoped, tag = 'input window, operand 0, single buffered']
    #allocation4 [shape = 's32[1]{0}', space=sflag, size = 0x4, scoped, tag = 'scoped memory for tpu_custom_call.1']
    #allocation5 [shape = 's32[1]{0}', space=sflag, size = 0x4, scoped, tag = 'scoped memory for tpu_custom_call.1']
    #allocation6 [shape = 'u8[2048]{0}', space=vmem, size = 0x800, scoped, tag = 'output window, operand 0, single buffered']
    %6 = vsyncpa [#allocation4], 0
    %7 = vsyncpa [#allocation5], 0
    // Predicated region
    $region2: #{tpu_custom_call.1} parent=1 // pred_check
      _
    $region3: #{tpu_custom_call.1} parent=1 // pred_check_branch
      %9 = sbr.rel (0) target = $region5
    $region4: #{tpu_custom_call.1} parent=1 // pred_region
      %s11 = ssub.s32 32, 32
      %12 = vsyncadd [#allocation4], %s11
      %s14 = sshll.u32 [#allocation3], 4
      %s15 = int_to_ptr.vmem [resolvable:$true] %s14
      %17 = dma.hbm_to_vmem [thread:$0]  %s0, 32, %s15, [#allocation4]
    $region5: #{tpu_custom_call.1} parent=1 // pred_fallthru
      _
    // Predicated region
    $region6: #{tpu_custom_call.1} parent=1 // pred_check
      _
    $region7: #{tpu_custom_call.1} parent=1 // pred_check_branch
      %19 = sbr.rel (0) target = $region9
    $region8: #{tpu_custom_call.1} parent=1 // pred_region
      %20 = dma.done [#allocation4], 32
    $region9: #{tpu_custom_call.1} parent=1 // pred_fallthru
      _
    %s21 = smul.u32 0, 8
    %p22 = scmp.eq.s32.totalorder 0, 0
    // Predicated region
    $region10: #{tpu_custom_call.1} parent=1 // pred_check
      %p23 = pneg %p22
    $region11: #{tpu_custom_call.1} parent=1 // pred_check_branch
      %25 = sbr.rel (%p23) target = $region13
    $region12: #{tpu_custom_call.1} parent=1 // pred_region
      %v26 = vld [vmem:[#allocation3] sm:$0x3]
      %v27 = vlaneseq
      %v28 = vshrl.u32 %v27, 7
      %v29 = vmul.u32 %v28, 4
      %v30 = vstv %s21
      %v31 = vadd.s32 %v30, %v29
      %v32 = vcvt.s32.f32 %v31
      %v33 = vlaneseq
      %v34 = vshrl.u32 %v33, 7
      %v35 = vsub.s32 0, %v34
      %v36 = vrot.slane %v26, %v35
      %v37 = vmul.f32 %v32, %v36
      %v38 = vlaneseq
      %v39 = vshrl.u32 %v38, 7
      %v40 = vsub.s32 1, %v39
      %v41 = vrot.slane %v26, %v40
      %v42 = vadd.f32 %v37, %v41
      %v43 = vand.u32 2147483647, %v42
      %vm44 = vcmp.le.f32.partialorder %v43, 0.7853982
      %vm45 = vcmp.lt.s32.totalorder %v42, 0
      %v46 = vand.u32 %v42, 2139095040
      %v47 = vshrl.u32 %v46, 23
      %v48 = vsub.s32 %v47, 127
      %v49 = vand.u32 2147483647, %v42
      %v50 = vand.u32 %v49, 8388607
      %v51 = vor.u32 %v50, 8388608
      %v52 = vsub.s32 0, %v51
      %v53 = vadd.s32 %v48, 1
      %vm54 = vcmp.gt.s32.totalorder %v53, 0
      %v55 = vsel %vm54, %v53, 0
      %v56 = vshrl.u32 %v55, 5
      %v57 = vand.u32 %v55, 31
      %v58 = vsub.s32 32, %v57
      %v59 = vshrl.u32 683565275, %v58
      %v60 = vshll.u32 683565275, %v57
      %v61 = vshrl.u32 2475754826, %v58
      %v62 = vor.u32 %v60, %v61
      %v63 = vshll.u32 2475754826, %v57
      %v64 = vshrl.u32 2131351028, %v58
      %v65 = vor.u32 %v63, %v64
      %v66 = vshll.u32 2131351028, %v57
      %v67 = vshrl.u32 2102212464, %v58
      %v68 = vor.u32 %v66, %v67
      %v69 = vshll.u32 2102212464, %v57
      %v70 = vshrl.u32 920167782, %v58
      %v71 = vor.u32 %v69, %v70
      %v72 = vshll.u32 920167782, %v57
      %v73 = vshrl.u32 1326507024, %v58
      %v74 = vor.u32 %v72, %v73
      %vm75 = vcmp.lt.s32.totalorder %v56, 1
      %vm76 = vcmp.lt.s32.totalorder %v56, 2
      %vm77 = vcmp.lt.s32.totalorder %v56, 3
      %vm78 = vcmp.lt.s32.totalorder %v56, 4
      %v79 = vsel %vm75, %v59, %v62
      %v80 = vsel %vm78, %v68, 2102212464
      %v81 = vsel %vm77, %v65, %v80
      %v82 = vsel %vm76, %v79, %v81
      %v83 = vsel %vm75, %v62, %v65
      %v84 = vsel %vm78, %v71, 920167782
      %v85 = vsel %vm77, %v68, %v84
      %v86 = vsel %vm76, %v83, %v85
      %v87 = vsel %vm75, %v65, %v68
      %v88 = vsel %vm78, %v74, 1326507024
      %v89 = vsel %vm77, %v71, %v88
      %v90 = vsel %vm76, %v87, %v89
      %v91 = vshll.u32 %v51, 8
      %v92 = vmul.u32.u64.compose %v91, %v90
      %v93 = vextract.low.u32 %v92
      %v94 = vextract.high.u32 %v92
      %v95 = vmul.u32.u64.compose %v91, %v86
      %v96 = vextract.low.u32 %v95
      %v97 = vextract.high.u32 %v95
      %v98 = vmul.u32 %v91, %v82
      %v99 = vadd.s32 %v94, %v96
      %vm100 = vc.u32 %v94, %v96
      %v101 = vadd.s32 %v97, 1
      %v102 = vsel %vm100, %v101, %v97
      %v103 = vadd.s32 %v98, %v102
      %v104 = vadd.s32 %v103, 536870912
      %v105 = vshrl.u32 %v104, 30
      %v106 = vshll.u32 %v105, 30
      %v107 = vsub.s32 %v103, %v106
      %vm108 = vcmp.lt.s32.totalorder %v107, 0
      %v109 = vsub.s32 0, %v107
      %v110 = vsel %vm108, %v109, %v107
      %v111 = vclz %v110
      %v112 = vsub.s32 %v111, 2
      %vm113 = vcmp.gt.s32.totalorder 0, %v112
      %v114 = vsel %vm113, 0, %v112
      %v115 = vsub.s32 32, %v114
      %v116 = vshll.u32 %v107, %v114
      %v117 = vshrl.u32 %v99, %v115
      %v118 = vor.u32 %v116, %v117
      %v119 = vsub.s32 4294967266, %v114
      %v120 = vadd.s32 %v119, 127
      %v121 = vshll.u32 %v120, 23
      %v122 = vor.u32 4788187, %v121
      %v123 = vand.u32 2147483647, %v122
      %v125 = vcvt.s32.f32 %v118
      %v126 = vmul.f32 %v125, %v123
      %v127 = vxor.u32 %v126, 2147483648
      %v128 = vsel %vm45, %v127, %v126
      %v129 = vsub.s32 4, %v105
      %v130 = vsel %vm45, %v129, %v105
      %v131 = vsel %vm44, %v42, %v128
      %v132 = vsel %vm44, 0, %v130
      %v133 = vcosq.f32.pop %v131
      %v134 = vsinq.f32.pop %v131
      %vm135 = vweird.f32 %v42
      %v136 = vadd.s32 %v132, 3
      %v137 = vand.u32 %v136, 3
      %vm138 = vcmp.lt.s32.totalorder %v137, 2
      %vm139 = vcmp.eq.s32.totalorder %v137, 0
      %v140 = vxor.u32 %v134, 2147483648
      %v141 = vsel %vm139, %v133, %v140
      %vm142 = vcmp.eq.s32.totalorder %v137, 2
      %v143 = vxor.u32 %v133, 2147483648
      %v144 = vsel %vm142, %v143, %v134
      %v145 = vsel %vm138, %v141, %v144
      %v146 = vsel %vm135, nan, %v145
      %147 = vst [vmem:[#allocation2] sm:$0x3] %v146
    $region13: #{tpu_custom_call.1} parent=1 // pred_fallthru
      _
    %v148 = vld [vmem:[#allocation2] sm:$0x3]
    %149 = vst [vmem:[#allocation6] sm:$0x3] %v148
    %s150 = scalar_lea.vmem [#allocation6], 2
    %151 = vst [vmem:[%s150] sm:$0x3] %v148
    // Predicated region
    $region14: #{tpu_custom_call.1} parent=1 // pred_check
      _
    $region15: #{tpu_custom_call.1} parent=1 // pred_check_branch
      %153 = sbr.rel (0) target = $region17
    $region16: #{tpu_custom_call.1} parent=1 // pred_region
      %s155 = ssub.s32 64, 64
      %156 = vsyncadd [#allocation5], %s155
      %s157 = sshll.u32 [#allocation6], 4
      %s158 = int_to_ptr.vmem [resolvable:$true] %s157
      %163 = dma.vmem_to_hbm [thread:$0]  %s158, 64, %s1, [#allocation5], 32, 32, 2
    $region17: #{tpu_custom_call.1} parent=1 // pred_fallthru
      _
    // Predicated region
    $region18: #{tpu_custom_call.1} parent=1 // pred_check
      _
    $region19: #{tpu_custom_call.1} parent=1 // pred_check_branch
      %165 = sbr.rel (0) target = $region21
    $region20: #{tpu_custom_call.1} parent=1 // pred_region
      %166 = dma.done [#allocation5], 64
    $region21: #{tpu_custom_call.1} parent=1 // pred_fallthru
      _
    %167 = vsyncpa [#allocation4], 1
    %168 = vsyncpa [#allocation5], 1

</llo_original>
